<compile_context>
chip_gen: v7x
topology: tpu7x:2x2x1
jax: 0.10.0
libtpu: 0.0.40
codegen_flags: <defaults>
</compile_context>

<pallas_src>
import functools

import jax
import jax.numpy as jnp
from jax.experimental import pallas as pl
from jax.experimental.pallas import tpu as pltpu

# MXU operand dtype; accumulation and all elementwise/gate math stay float32.
MATMUL_DTYPE = jnp.bfloat16


# ---------------------------------------------------------------------------
# Fused per-layer kernel: input projection + recurrence + output projection
# ---------------------------------------------------------------------------
def _fused_lstmp_layer_kernel(x_ref, wih_ref, whh_ref, bias_ref, wp_ref, bp_ref,
                              y_ref, h_sc, c_sc, gx_sc, hs_sc, *, tb, n, c):
    """One time chunk of a fused LSTMP layer.

    x_ref   : (tb*n, Din) f32   input rows for this chunk (time-major, row = t*n + b)
    wih_ref : (Din, 4C)   bf16  input weights (whole array, VMEM resident)
    whh_ref : (C, 4C)     bf16  recurrent weights (whole array, VMEM resident)
    bias_ref: (1, 4C)     f32   b_ih + b_hh
    wp_ref  : (C, H)      bf16  projection weights
    bp_ref  : (1, H)      f32   projection bias
    y_ref   : (tb*n, H)   f32   output block
    h_sc/c_sc : (n, C)    f32   recurrent carries (persist across grid steps)
    gx_sc   : (tb*n, 4C)  f32   chunk input-projection scratch
    hs_sc   : (tb*n, C)   f32   chunk hidden-state scratch
    """
    # Re-initialize the recurrent carries at the start of the sequence.
    @pl.when(pl.program_id(0) == 0)
    def _():
        h_sc[...] = jnp.zeros_like(h_sc)
        c_sc[...] = jnp.zeros_like(c_sc)

    # (1) Time-parallel input projection for the whole chunk: one MXU matmul.
    #     bf16 cast happens in-kernel (VPU work hidden under DMA/MXU).
    gx_sc[...] = (
        jnp.dot(x_ref[...].astype(MATMUL_DTYPE), wih_ref[...],
                preferred_element_type=jnp.float32)
        + bias_ref[...])

    # Gate-nonlinearity constants, hoisted out of the serial loop.
    # PyTorch gate order along the 4C lanes: i, f, g, o.
    # sigmoid(x) = 0.5 * tanh(0.5 * x) + 0.5, so a single full-width tanh plus
    # a lane-masked affine covers all four gates (1 EUP push per step).
    lane = jax.lax.broadcasted_iota(jnp.int32, (n, 4 * c), 1)
    is_g = jnp.logical_and(lane >= 2 * c, lane < 3 * c)
    pre_scale = jnp.where(is_g, 1.0, 0.5).astype(jnp.float32)
    post_mul = pre_scale
    post_add = jnp.where(is_g, 0.0, 0.5).astype(jnp.float32)

    whh = whh_ref[...]            # single VMEM load of recurrent weights (bf16)

    # (2) Serial recurrence over the chunk (static unroll -> static offsets).
    h = h_sc[...]
    cc = c_sc[...]
    for t in range(tb):
        r0 = t * n
        gates = gx_sc[r0:r0 + n, :] + jnp.dot(
            h.astype(MATMUL_DTYPE), whh, preferred_element_type=jnp.float32)
        th = jnp.tanh(gates * pre_scale)          # one tanh over (n, 4C)
        act = th * post_mul + post_add            # sigmoid for i/f/o, tanh for g
        i_g = act[:, 0 * c:1 * c]
        f_g = act[:, 1 * c:2 * c]
        g_g = act[:, 2 * c:3 * c]
        o_g = act[:, 3 * c:4 * c]
        cc = f_g * cc + i_g * g_g
        h = o_g * jnp.tanh(cc)
        hs_sc[r0:r0 + n, :] = h
    h_sc[...] = h
    c_sc[...] = cc

    # (3) Chunk output projection + tanh: second MXU matmul, fused here so hs
    #     never leaves VMEM.
    y = jnp.dot(hs_sc[...].astype(MATMUL_DTYPE), wp_ref[...],
                preferred_element_type=jnp.float32) + bp_ref[...]
    y_ref[...] = jnp.tanh(y).astype(y_ref.dtype)


def _pick_time_chunk(t, n, max_chunk=32):
    """Fixed-size time chunk; T is padded up to a multiple of it outside."""
    tb = min(t, max_chunk)
    # Block rows (tb * n) must be a multiple of 8 sublanes unless a single
    # block covers the whole (padded == original) sequence.
    while tb < t and (tb * n) % 8 != 0:
        tb += 1
    return tb


def lstmp_layer(x, lp, *, max_chunk=32):
    """One LSTMP layer: LSTM(D_in -> C) then tanh(Linear(C -> H)).  x: (T,N,D_in)."""
    T, N, D_in = x.shape
    C = lp["w_hh_t"].shape[0]
    H = lp["w_p_t"].shape[1]

    tb = _pick_time_chunk(T, N, max_chunk)
    n_chunks = -(-T // tb)
    T_pad = n_chunks * tb
    if T_pad != T:
        # Pad the tail; padded steps compute garbage that is sliced off below
        # (they run after the real sequence, so real outputs are unaffected).
        x = jnp.pad(x, ((0, T_pad - T), (0, 0), (0, 0)))
    x2d = x.reshape(T_pad * N, D_in)          # free row-major reshape in XLA
    rows = tb * N

    # Rough VMEM budget -> explicit scoped limit (default is 16/32 MiB).
    weight_bytes = (D_in * 4 * C + C * 4 * C + C * H) * 2 + (4 * C + H) * 4
    io_bytes = 2 * (rows * D_in + rows * H) * 4          # double-buffered blocks
    scratch_bytes = (2 * N * C + rows * 4 * C + rows * C) * 4
    vmem_limit = int(min(64 * 2**20,
                         max(32 * 2**20, 2 * (weight_bytes + io_bytes + scratch_bytes))))

    flops = 2 * T_pad * N * (D_in * 4 * C + C * 4 * C + C * H)
    transcendentals = T_pad * N * (4 * C + C + H)
    bytes_accessed = (T_pad * N * D_in + T_pad * N * H) * 4 + weight_bytes

    y2d = pl.pallas_call(
        functools.partial(_fused_lstmp_layer_kernel, tb=tb, n=N, c=C),
        out_shape=jax.ShapeDtypeStruct((T_pad * N, H), jnp.float32),
        grid_spec=pltpu.PrefetchScalarGridSpec(
            num_scalar_prefetch=0,
            grid=(n_chunks,),
            in_specs=[
                pl.BlockSpec((rows, D_in), lambda t: (t, 0)),
                # whole-array, single-buffered VMEM-resident weights / biases
                pl.BlockSpec(memory_space=pltpu.MemorySpace.VMEM),  # w_ih^T bf16
                pl.BlockSpec(memory_space=pltpu.MemorySpace.VMEM),  # w_hh^T bf16
                pl.BlockSpec(memory_space=pltpu.MemorySpace.VMEM),  # b_ih+b_hh f32
                pl.BlockSpec(memory_space=pltpu.MemorySpace.VMEM),  # w_p^T bf16
                pl.BlockSpec(memory_space=pltpu.MemorySpace.VMEM),  # b_p f32
            ],
            out_specs=pl.BlockSpec((rows, H), lambda t: (t, 0)),
            scratch_shapes=[
                pltpu.VMEM((N, C), jnp.float32),           # h carry
                pltpu.VMEM((N, C), jnp.float32),           # c carry
                pltpu.VMEM((rows, 4 * C), jnp.float32),    # gx chunk
                pltpu.VMEM((rows, C), jnp.float32),        # hs chunk
            ],
        ),
        compiler_params=pltpu.CompilerParams(
            dimension_semantics=("arbitrary",),            # true serial recurrence
            vmem_limit_bytes=vmem_limit,
        ),
        cost_estimate=pl.CostEstimate(
            flops=flops, transcendentals=transcendentals,
            bytes_accessed=bytes_accessed),
    )(x2d, lp["w_ih_t"], lp["w_hh_t"], lp["bias"], lp["w_p_t"], lp["b_p"])

    y = y2d.reshape(T_pad, N, H)
    if T_pad != T:
        y = y[:T]
    return y


# ---------------------------------------------------------------------------
# Parameters / forward
# ---------------------------------------------------------------------------
def init_lstmp_params(key, idim, elayers, cdim, hdim):
    """Deterministic synthetic parameters matching torch.nn.LSTM / nn.Linear shapes."""
    params = []
    for layer in range(elayers):
        d_in = idim if layer == 0 else hdim
        key, *ks = jax.random.split(key, 7)
        stdv = 1.0 / jnp.sqrt(cdim)
        params.append(dict(
            w_ih=jax.random.uniform(ks[0], (4 * cdim, d_in), jnp.float32, -stdv, stdv),
            w_hh=jax.random.uniform(ks[1], (4 * cdim, cdim), jnp.float32, -stdv, stdv),
            b_ih=jax.random.uniform(ks[2], (4 * cdim,), jnp.float32, -stdv, stdv),
            b_hh=jax.random.uniform(ks[3], (4 * cdim,), jnp.float32, -stdv, stdv),
            w_p=jax.random.uniform(ks[4], (hdim, cdim), jnp.float32, -stdv, stdv),
            b_p=jax.random.uniform(ks[5], (hdim,), jnp.float32, -stdv, stdv),
        ))
    return params


def prepare_lstmp_params(params, matmul_dtype=MATMUL_DTYPE):
    """One-time layout/dtype prep: transpose + bf16-cast weights, fuse biases."""
    prepared = []
    for p in params:
        prepared.append(dict(
            w_ih_t=jnp.asarray(p["w_ih"].T, matmul_dtype),
            w_hh_t=jnp.asarray(p["w_hh"].T, matmul_dtype),
            bias=jnp.asarray(p["b_ih"] + p["b_hh"], jnp.float32).reshape(1, -1),
            w_p_t=jnp.asarray(p["w_p"].T, matmul_dtype),
            b_p=jnp.asarray(p["b_p"], jnp.float32).reshape(1, -1),
        ))
    return prepared


def lstmp_forward(xpad, prepared_params):
    """LSTMP.forward: for each layer, LSTM -> Linear projection -> tanh."""
    x = jnp.asarray(xpad, jnp.float32)
    for lp in prepared_params:
        x = lstmp_layer(x, lp)
    return x


def _lstmp_reference(xpad, params):
    """Pure-JAX f32 reference matching PyTorch LSTM gate order (i, f, g, o)."""
    x = jnp.asarray(xpad, jnp.float32)
    for p in params:
        _, N, _ = x.shape
        C = p["w_hh"].shape[1]
        wih_t, whh_t = p["w_ih"].T, p["w_hh"].T
        b = p["b_ih"] + p["b_hh"]

        def step(carry, xt):
            h, c = carry
            gates = xt @ wih_t + h @ whh_t + b
            i = jax.nn.sigmoid(gates[:, 0 * C:1 * C])
            f = jax.nn.sigmoid(gates[:, 1 * C:2 * C])
            g = jnp.tanh(gates[:, 2 * C:3 * C])
            o = jax.nn.sigmoid(gates[:, 3 * C:4 * C])
            c = f * c + i * g
            h = o * jnp.tanh(c)
            return (h, c), h

        init = (jnp.zeros((N, C), jnp.float32), jnp.zeros((N, C), jnp.float32))
        _, hs = jax.lax.scan(step, init, x)
        x = jnp.tanh(hs @ p["w_p"].T + p["b_p"])
    return x


if __name__ == "__main__":
    # Small shapes consistent with the module: seq T=8, batch N=2,
    # idim=16, cdim=32, hdim=32, elayers=2.
    T, N, idim, cdim, hdim, elayers = 8, 2, 16, 32, 32, 2

    key = jax.random.PRNGKey(0)
    kx, kp = jax.random.split(key)
    xpad = jax.random.normal(kx, (T, N, idim), jnp.float32)
    params = init_lstmp_params(kp, idim, elayers, cdim, hdim)
    prepared = prepare_lstmp_params(params)

    out = jax.block_until_ready(lstmp_forward(xpad, prepared))
    assert out.shape == (T, N, hdim), out.shape

    # Tolerance check against the pure-f32 reference (bf16 MXU operands,
    # f32 accumulation and f32 gate math).
    ref = jax.block_until_ready(_lstmp_reference(xpad, params))
    max_err = float(jnp.max(jnp.abs(out - ref)))
    assert max_err < 5e-2, max_err

    print("KERNEL_OK")
</pallas_src>

<mosaic_0001>
module attributes {stable_mosaic.version = 11 : i64} {
  func.func @_fused_lstmp_layer_kernel(%arg0: i32, %arg1: memref<16x16xf32, #tpu.memory_space<vmem>>, %arg2: memref<16x128xbf16, #tpu.memory_space<vmem>>, %arg3: memref<32x128xbf16, #tpu.memory_space<vmem>>, %arg4: memref<1x128xf32, #tpu.memory_space<vmem>>, %arg5: memref<32x32xbf16, #tpu.memory_space<vmem>>, %arg6: memref<1x32xf32, #tpu.memory_space<vmem>>, %arg7: memref<16x32xf32, #tpu.memory_space<vmem>>, %arg8: memref<2x32xf32, #tpu.memory_space<vmem>>, %arg9: memref<2x32xf32, #tpu.memory_space<vmem>>, %arg10: memref<16x128xf32, #tpu.memory_space<vmem>>, %arg11: memref<16x32xf32, #tpu.memory_space<vmem>>) attributes {dimension_semantics = [#tpu.dimension_semantics<arbitrary>], iteration_bounds = array<i64: 1>, scalar_prefetch = 0 : i64, scratch_operands = 4 : i64, tpu.core_type = #tpu.core_type<tc>, window_params = [{transform_indices = @transform_0, window_bounds = array<i64: 16, 16>}, {pipeline_mode = #tpu.pipeline_mode<synchronous>, transform_indices = @transform_1, window_bounds = array<i64: 16, 128>}, {pipeline_mode = #tpu.pipeline_mode<synchronous>, transform_indices = @transform_2, window_bounds = array<i64: 32, 128>}, {pipeline_mode = #tpu.pipeline_mode<synchronous>, transform_indices = @transform_3, window_bounds = array<i64: 1, 128>}, {pipeline_mode = #tpu.pipeline_mode<synchronous>, transform_indices = @transform_4, window_bounds = array<i64: 32, 32>}, {pipeline_mode = #tpu.pipeline_mode<synchronous>, transform_indices = @transform_5, window_bounds = array<i64: 1, 32>}, {transform_indices = @transform_6, window_bounds = array<i64: 16, 32>}]} {
    %c0_i32 = arith.constant 0 : i32
    %0 = arith.cmpi eq, %arg0, %c0_i32 : i32
    %1 = arith.extui %0 : i1 to i32
    %c0_i32_0 = arith.constant 0 : i32
    %2 = arith.cmpi ne, %1, %c0_i32_0 : i32
    scf.if %2 {
      %cst_64 = arith.constant 0.000000e+00 : f32
      %181 = vector.broadcast %cst_64 : f32 to vector<2x32xf32>
      %c0_65 = arith.constant 0 : index
      %c0_66 = arith.constant 0 : index
      %182 = vector.load %arg8[%c0_65, %c0_66] : memref<2x32xf32, #tpu.memory_space<vmem>>, vector<2x32xf32>
      tpu.vector_store %arg8[%c0_65, %c0_66], %181 {strides = array<i32>} : memref<2x32xf32, #tpu.memory_space<vmem>>, vector<2x32xf32>,
      %cst_67 = arith.constant 0.000000e+00 : f32
      %183 = vector.broadcast %cst_67 : f32 to vector<2x32xf32>
      %c0_68 = arith.constant 0 : index
      %c0_69 = arith.constant 0 : index
      %184 = vector.load %arg9[%c0_68, %c0_69] : memref<2x32xf32, #tpu.memory_space<vmem>>, vector<2x32xf32>
      tpu.vector_store %arg9[%c0_68, %c0_69], %183 {strides = array<i32>} : memref<2x32xf32, #tpu.memory_space<vmem>>, vector<2x32xf32>,
    } else {
    }
    %c0 = arith.constant 0 : index
    %c0_1 = arith.constant 0 : index
    %3 = vector.load %arg1[%c0, %c0_1] : memref<16x16xf32, #tpu.memory_space<vmem>>, vector<16x16xf32>
    %4 = arith.truncf %3 : vector<16x16xf32> to vector<16x16xbf16>
    %c0_2 = arith.constant 0 : index
    %c0_3 = arith.constant 0 : index
    %5 = vector.load %arg2[%c0_2, %c0_3] : memref<16x128xbf16, #tpu.memory_space<vmem>>, vector<16x128xbf16>
    %cst = arith.constant dense<0.000000e+00> : vector<16x128xf32>
    %6 = tpu.matmul %4, %5, %cst {dimension_numbers = #tpu.dot_dimension_numbers<[1], [0], [0], [1], [0, 0, 1, 1], [], []>} : vector<16x16xbf16>, vector<16x128xbf16>, vector<16x128xf32> -> vector<16x128xf32>
    %c0_4 = arith.constant 0 : index
    %c0_5 = arith.constant 0 : index
    %7 = vector.load %arg4[%c0_4, %c0_5] : memref<1x128xf32, #tpu.memory_space<vmem>>, vector<1x128xf32>
    %8 = vector.broadcast %7 : vector<1x128xf32> to vector<16x128xf32>
    %9 = arith.addf %6, %8 : vector<16x128xf32>
    %c0_6 = arith.constant 0 : index
    %c0_7 = arith.constant 0 : index
    %10 = vector.load %arg10[%c0_6, %c0_7] : memref<16x128xf32, #tpu.memory_space<vmem>>, vector<16x128xf32>
    tpu.vector_store %arg10[%c0_6, %c0_7], %9 {strides = array<i32>} : memref<16x128xf32, #tpu.memory_space<vmem>>, vector<16x128xf32>,
    %11 = tpu.iota {dimensions = array<i32: 1>} : vector<2x128xi32>
    %c64_i32 = arith.constant 64 : i32
    %12 = vector.broadcast %c64_i32 : i32 to vector<2x128xi32>
    %13 = arith.cmpi sge, %11, %12 : vector<2x128xi32>
    %c96_i32 = arith.constant 96 : i32
    %14 = vector.broadcast %c96_i32 : i32 to vector<2x128xi32>
    %15 = arith.cmpi slt, %11, %14 : vector<2x128xi32>
    %16 = arith.andi %13, %15 : vector<2x128xi1>
    %cst_8 = arith.constant 1.000000e+00 : f32
    %cst_9 = arith.constant 5.000000e-01 : f32
    %17 = vector.broadcast %cst_8 : f32 to vector<2x128xf32>
    %18 = vector.broadcast %cst_9 : f32 to vector<2x128xf32>
    %19 = arith.select %16, %17, %18 : vector<2x128xi1>, vector<2x128xf32>
    %cst_10 = arith.constant 0.000000e+00 : f32
    %cst_11 = arith.constant 5.000000e-01 : f32
    %20 = vector.broadcast %cst_10 : f32 to vector<2x128xf32>
    %21 = vector.broadcast %cst_11 : f32 to vector<2x128xf32>
    %22 = arith.select %16, %20, %21 : vector<2x128xi1>, vector<2x128xf32>
    %c0_12 = arith.constant 0 : index
    %c0_13 = arith.constant 0 : index
    %23 = vector.load %arg3[%c0_12, %c0_13] : memref<32x128xbf16, #tpu.memory_space<vmem>>, vector<32x128xbf16>
    %c0_14 = arith.constant 0 : index
    %c0_15 = arith.constant 0 : index
    %24 = vector.load %arg8[%c0_14, %c0_15] : memref<2x32xf32, #tpu.memory_space<vmem>>, vector<2x32xf32>
    %c0_16 = arith.constant 0 : index
    %c0_17 = arith.constant 0 : index
    %25 = vector.load %arg9[%c0_16, %c0_17] : memref<2x32xf32, #tpu.memory_space<vmem>>, vector<2x32xf32>
    %c0_18 = arith.constant 0 : index
    %c0_19 = arith.constant 0 : index
    %26 = vector.load %arg10[%c0_18, %c0_19] : memref<16x128xf32, #tpu.memory_space<vmem>>, vector<2x128xf32>
    %27 = arith.truncf %24 : vector<2x32xf32> to vector<2x32xbf16>
    %cst_20 = arith.constant dense<0.000000e+00> : vector<2x128xf32>
    %28 = tpu.matmul %27, %23, %cst_20 {dimension_numbers = #tpu.dot_dimension_numbers<[1], [0], [0], [1], [0, 0, 1, 1], [], []>} : vector<2x32xbf16>, vector<32x128xbf16>, vector<2x128xf32> -> vector<2x128xf32>
    %29 = arith.addf %26, %28 : vector<2x128xf32>
    %30 = arith.mulf %29, %19 : vector<2x128xf32>
    %31 = math.tanh %30 : vector<2x128xf32>
    %32 = arith.mulf %31, %19 : vector<2x128xf32>
    %33 = arith.addf %32, %22 : vector<2x128xf32>
    %34 = vector.extract_strided_slice %33 {offsets = [0, 0], sizes = [2, 32], strides = [1, 1]} : vector<2x128xf32> to vector<2x32xf32>
    %35 = vector.extract_strided_slice %33 {offsets = [0, 32], sizes = [2, 32], strides = [1, 1]} : vector<2x128xf32> to vector<2x32xf32>
    %36 = vector.extract_strided_slice %33 {offsets = [0, 64], sizes = [2, 32], strides = [1, 1]} : vector<2x128xf32> to vector<2x32xf32>
    %37 = vector.extract_strided_slice %33 {offsets = [0, 96], sizes = [2, 32], strides = [1, 1]} : vector<2x128xf32> to vector<2x32xf32>
    %38 = arith.mulf %35, %25 : vector<2x32xf32>
    %39 = arith.mulf %34, %36 : vector<2x32xf32>
    %40 = arith.addf %38, %39 : vector<2x32xf32>
    %41 = math.tanh %40 : vector<2x32xf32>
    %42 = arith.mulf %37, %41 : vector<2x32xf32>
    %c0_21 = arith.constant 0 : index
    %c0_22 = arith.constant 0 : index
    %43 = vector.load %arg11[%c0_21, %c0_22] : memref<16x32xf32, #tpu.memory_space<vmem>>, vector<2x32xf32>
    tpu.vector_store %arg11[%c0_21, %c0_22], %42 {strides = array<i32>} : memref<16x32xf32, #tpu.memory_space<vmem>>, vector<2x32xf32>,
    %c2 = arith.constant 2 : index
    %c0_23 = arith.constant 0 : index
    %44 = vector.load %arg10[%c2, %c0_23] : memref<16x128xf32, #tpu.memory_space<vmem>>, vector<2x128xf32>
    %45 = arith.truncf %42 : vector<2x32xf32> to vector<2x32xbf16>
    %cst_24 = arith.constant dense<0.000000e+00> : vector<2x128xf32>
    %46 = tpu.matmul %45, %23, %cst_24 {dimension_numbers = #tpu.dot_dimension_numbers<[1], [0], [0], [1], [0, 0, 1, 1], [], []>} : vector<2x32xbf16>, vector<32x128xbf16>, vector<2x128xf32> -> vector<2x128xf32>
    %47 = arith.addf %44, %46 : vector<2x128xf32>
    %48 = arith.mulf %47, %19 : vector<2x128xf32>
    %49 = math.tanh %48 : vector<2x128xf32>
    %50 = arith.mulf %49, %19 : vector<2x128xf32>
    %51 = arith.addf %50, %22 : vector<2x128xf32>
    %52 = vector.extract_strided_slice %51 {offsets = [0, 0], sizes = [2, 32], strides = [1, 1]} : vector<2x128xf32> to vector<2x32xf32>
    %53 = vector.extract_strided_slice %51 {offsets = [0, 32], sizes = [2, 32], strides = [1, 1]} : vector<2x128xf32> to vector<2x32xf32>
    %54 = vector.extract_strided_slice %51 {offsets = [0, 64], sizes = [2, 32], strides = [1, 1]} : vector<2x128xf32> to vector<2x32xf32>
    %55 = vector.extract_strided_slice %51 {offsets = [0, 96], sizes = [2, 32], strides = [1, 1]} : vector<2x128xf32> to vector<2x32xf32>
    %56 = arith.mulf %53, %40 : vector<2x32xf32>
    %57 = arith.mulf %52, %54 : vector<2x32xf32>
    %58 = arith.addf %56, %57 : vector<2x32xf32>
    %59 = math.tanh %58 : vector<2x32xf32>
    %60 = arith.mulf %55, %59 : vector<2x32xf32>
    %c2_25 = arith.constant 2 : index
    %c0_26 = arith.constant 0 : index
    %61 = vector.load %arg11[%c2_25, %c0_26] : memref<16x32xf32, #tpu.memory_space<vmem>>, vector<2x32xf32>
    tpu.vector_store %arg11[%c2_25, %c0_26], %60 {strides = array<i32>} : memref<16x32xf32, #tpu.memory_space<vmem>>, vector<2x32xf32>,
    %c4 = arith.constant 4 : index
    %c0_27 = arith.constant 0 : index
    %62 = vector.load %arg10[%c4, %c0_27] : memref<16x128xf32, #tpu.memory_space<vmem>>, vector<2x128xf32>
    %63 = arith.truncf %60 : vector<2x32xf32> to vector<2x32xbf16>
    %cst_28 = arith.constant dense<0.000000e+00> : vector<2x128xf32>
    %64 = tpu.matmul %63, %23, %cst_28 {dimension_numbers = #tpu.dot_dimension_numbers<[1], [0], [0], [1], [0, 0, 1, 1], [], []>} : vector<2x32xbf16>, vector<32x128xbf16>, vector<2x128xf32> -> vector<2x128xf32>
    %65 = arith.addf %62, %64 : vector<2x128xf32>
    %66 = arith.mulf %65, %19 : vector<2x128xf32>
    %67 = math.tanh %66 : vector<2x128xf32>
    %68 = arith.mulf %67, %19 : vector<2x128xf32>
    %69 = arith.addf %68, %22 : vector<2x128xf32>
    %70 = vector.extract_strided_slice %69 {offsets = [0, 0], sizes = [2, 32], strides = [1, 1]} : vector<2x128xf32> to vector<2x32xf32>
    %71 = vector.extract_strided_slice %69 {offsets = [0, 32], sizes = [2, 32], strides = [1, 1]} : vector<2x128xf32> to vector<2x32xf32>
    %72 = vector.extract_strided_slice %69 {offsets = [0, 64], sizes = [2, 32], strides = [1, 1]} : vector<2x128xf32> to vector<2x32xf32>
    %73 = vector.extract_strided_slice %69 {offsets = [0, 96], sizes = [2, 32], strides = [1, 1]} : vector<2x128xf32> to vector<2x32xf32>
    %74 = arith.mulf %71, %58 : vector<2x32xf32>
    %75 = arith.mulf %70, %72 : vector<2x32xf32>
    %76 = arith.addf %74, %75 : vector<2x32xf32>
    %77 = math.tanh %76 : vector<2x32xf32>
    %78 = arith.mulf %73, %77 : vector<2x32xf32>
    %c4_29 = arith.constant 4 : index
    %c0_30 = arith.constant 0 : index
    %79 = vector.load %arg11[%c4_29, %c0_30] : memref<16x32xf32, #tpu.memory_space<vmem>>, vector<2x32xf32>
    tpu.vector_store %arg11[%c4_29, %c0_30], %78 {strides = array<i32>} : memref<16x32xf32, #tpu.memory_space<vmem>>, vector<2x32xf32>,
    %c6 = arith.constant 6 : index
    %c0_31 = arith.constant 0 : index
    %80 = vector.load %arg10[%c6, %c0_31] : memref<16x128xf32, #tpu.memory_space<vmem>>, vector<2x128xf32>
    %81 = arith.truncf %78 : vector<2x32xf32> to vector<2x32xbf16>
    %cst_32 = arith.constant dense<0.000000e+00> : vector<2x128xf32>
    %82 = tpu.matmul %81, %23, %cst_32 {dimension_numbers = #tpu.dot_dimension_numbers<[1], [0], [0], [1], [0, 0, 1, 1], [], []>} : vector<2x32xbf16>, vector<32x128xbf16>, vector<2x128xf32> -> vector<2x128xf32>
    %83 = arith.addf %80, %82 : vector<2x128xf32>
    %84 = arith.mulf %83, %19 : vector<2x128xf32>
    %85 = math.tanh %84 : vector<2x128xf32>
    %86 = arith.mulf %85, %19 : vector<2x128xf32>
    %87 = arith.addf %86, %22 : vector<2x128xf32>
    %88 = vector.extract_strided_slice %87 {offsets = [0, 0], sizes = [2, 32], strides = [1, 1]} : vector<2x128xf32> to vector<2x32xf32>
    %89 = vector.extract_strided_slice %87 {offsets = [0, 32], sizes = [2, 32], strides = [1, 1]} : vector<2x128xf32> to vector<2x32xf32>
    %90 = vector.extract_strided_slice %87 {offsets = [0, 64], sizes = [2, 32], strides = [1, 1]} : vector<2x128xf32> to vector<2x32xf32>
    %91 = vector.extract_strided_slice %87 {offsets = [0, 96], sizes = [2, 32], strides = [1, 1]} : vector<2x128xf32> to vector<2x32xf32>
    %92 = arith.mulf %89, %76 : vector<2x32xf32>
    %93 = arith.mulf %88, %90 : vector<2x32xf32>
    %94 = arith.addf %92, %93 : vector<2x32xf32>
    %95 = math.tanh %94 : vector<2x32xf32>
    %96 = arith.mulf %91, %95 : vector<2x32xf32>
    %c6_33 = arith.constant 6 : index
    %c0_34 = arith.constant 0 : index
    %97 = vector.load %arg11[%c6_33, %c0_34] : memref<16x32xf32, #tpu.memory_space<vmem>>, vector<2x32xf32>
    tpu.vector_store %arg11[%c6_33, %c0_34], %96 {strides = array<i32>} : memref<16x32xf32, #tpu.memory_space<vmem>>, vector<2x32xf32>,
    %c8 = arith.constant 8 : index
    %c0_35 = arith.constant 0 : index
    %98 = vector.load %arg10[%c8, %c0_35] : memref<16x128xf32, #tpu.memory_space<vmem>>, vector<2x128xf32>
    %99 = arith.truncf %96 : vector<2x32xf32> to vector<2x32xbf16>
    %cst_36 = arith.constant dense<0.000000e+00> : vector<2x128xf32>
    %100 = tpu.matmul %99, %23, %cst_36 {dimension_numbers = #tpu.dot_dimension_numbers<[1], [0], [0], [1], [0, 0, 1, 1], [], []>} : vector<2x32xbf16>, vector<32x128xbf16>, vector<2x128xf32> -> vector<2x128xf32>
    %101 = arith.addf %98, %100 : vector<2x128xf32>
    %102 = arith.mulf %101, %19 : vector<2x128xf32>
    %103 = math.tanh %102 : vector<2x128xf32>
    %104 = arith.mulf %103, %19 : vector<2x128xf32>
    %105 = arith.addf %104, %22 : vector<2x128xf32>
    %106 = vector.extract_strided_slice %105 {offsets = [0, 0], sizes = [2, 32], strides = [1, 1]} : vector<2x128xf32> to vector<2x32xf32>
    %107 = vector.extract_strided_slice %105 {offsets = [0, 32], sizes = [2, 32], strides = [1, 1]} : vector<2x128xf32> to vector<2x32xf32>
    %108 = vector.extract_strided_slice %105 {offsets = [0, 64], sizes = [2, 32], strides = [1, 1]} : vector<2x128xf32> to vector<2x32xf32>
    %109 = vector.extract_strided_slice %105 {offsets = [0, 96], sizes = [2, 32], strides = [1, 1]} : vector<2x128xf32> to vector<2x32xf32>
    %110 = arith.mulf %107, %94 : vector<2x32xf32>
    %111 = arith.mulf %106, %108 : vector<2x32xf32>
    %112 = arith.addf %110, %111 : vector<2x32xf32>
    %113 = math.tanh %112 : vector<2x32xf32>
    %114 = arith.mulf %109, %113 : vector<2x32xf32>
    %c8_37 = arith.constant 8 : index
    %c0_38 = arith.constant 0 : index
    %115 = vector.load %arg11[%c8_37, %c0_38] : memref<16x32xf32, #tpu.memory_space<vmem>>, vector<2x32xf32>
    tpu.vector_store %arg11[%c8_37, %c0_38], %114 {strides = array<i32>} : memref<16x32xf32, #tpu.memory_space<vmem>>, vector<2x32xf32>,
    %c10 = arith.constant 10 : index
    %c0_39 = arith.constant 0 : index
    %116 = vector.load %arg10[%c10, %c0_39] : memref<16x128xf32, #tpu.memory_space<vmem>>, vector<2x128xf32>
    %117 = arith.truncf %114 : vector<2x32xf32> to vector<2x32xbf16>
    %cst_40 = arith.constant dense<0.000000e+00> : vector<2x128xf32>
    %118 = tpu.matmul %117, %23, %cst_40 {dimension_numbers = #tpu.dot_dimension_numbers<[1], [0], [0], [1], [0, 0, 1, 1], [], []>} : vector<2x32xbf16>, vector<32x128xbf16>, vector<2x128xf32> -> vector<2x128xf32>
    %119 = arith.addf %116, %118 : vector<2x128xf32>
    %120 = arith.mulf %119, %19 : vector<2x128xf32>
    %121 = math.tanh %120 : vector<2x128xf32>
    %122 = arith.mulf %121, %19 : vector<2x128xf32>
    %123 = arith.addf %122, %22 : vector<2x128xf32>
    %124 = vector.extract_strided_slice %123 {offsets = [0, 0], sizes = [2, 32], strides = [1, 1]} : vector<2x128xf32> to vector<2x32xf32>
    %125 = vector.extract_strided_slice %123 {offsets = [0, 32], sizes = [2, 32], strides = [1, 1]} : vector<2x128xf32> to vector<2x32xf32>
    %126 = vector.extract_strided_slice %123 {offsets = [0, 64], sizes = [2, 32], strides = [1, 1]} : vector<2x128xf32> to vector<2x32xf32>
    %127 = vector.extract_strided_slice %123 {offsets = [0, 96], sizes = [2, 32], strides = [1, 1]} : vector<2x128xf32> to vector<2x32xf32>
    %128 = arith.mulf %125, %112 : vector<2x32xf32>
    %129 = arith.mulf %124, %126 : vector<2x32xf32>
    %130 = arith.addf %128, %129 : vector<2x32xf32>
    %131 = math.tanh %130 : vector<2x32xf32>
    %132 = arith.mulf %127, %131 : vector<2x32xf32>
    %c10_41 = arith.constant 10 : index
    %c0_42 = arith.constant 0 : index
    %133 = vector.load %arg11[%c10_41, %c0_42] : memref<16x32xf32, #tpu.memory_space<vmem>>, vector<2x32xf32>
    tpu.vector_store %arg11[%c10_41, %c0_42], %132 {strides = array<i32>} : memref<16x32xf32, #tpu.memory_space<vmem>>, vector<2x32xf32>,
    %c12 = arith.constant 12 : index
    %c0_43 = arith.constant 0 : index
    %134 = vector.load %arg10[%c12, %c0_43] : memref<16x128xf32, #tpu.memory_space<vmem>>, vector<2x128xf32>
    %135 = arith.truncf %132 : vector<2x32xf32> to vector<2x32xbf16>
    %cst_44 = arith.constant dense<0.000000e+00> : vector<2x128xf32>
    %136 = tpu.matmul %135, %23, %cst_44 {dimension_numbers = #tpu.dot_dimension_numbers<[1], [0], [0], [1], [0, 0, 1, 1], [], []>} : vector<2x32xbf16>, vector<32x128xbf16>, vector<2x128xf32> -> vector<2x128xf32>
    %137 = arith.addf %134, %136 : vector<2x128xf32>
    %138 = arith.mulf %137, %19 : vector<2x128xf32>
    %139 = math.tanh %138 : vector<2x128xf32>
    %140 = arith.mulf %139, %19 : vector<2x128xf32>
    %141 = arith.addf %140, %22 : vector<2x128xf32>
    %142 = vector.extract_strided_slice %141 {offsets = [0, 0], sizes = [2, 32], strides = [1, 1]} : vector<2x128xf32> to vector<2x32xf32>
    %143 = vector.extract_strided_slice %141 {offsets = [0, 32], sizes = [2, 32], strides = [1, 1]} : vector<2x128xf32> to vector<2x32xf32>
    %144 = vector.extract_strided_slice %141 {offsets = [0, 64], sizes = [2, 32], strides = [1, 1]} : vector<2x128xf32> to vector<2x32xf32>
    %145 = vector.extract_strided_slice %141 {offsets = [0, 96], sizes = [2, 32], strides = [1, 1]} : vector<2x128xf32> to vector<2x32xf32>
    %146 = arith.mulf %143, %130 : vector<2x32xf32>
    %147 = arith.mulf %142, %144 : vector<2x32xf32>
    %148 = arith.addf %146, %147 : vector<2x32xf32>
    %149 = math.tanh %148 : vector<2x32xf32>
    %150 = arith.mulf %145, %149 : vector<2x32xf32>
    %c12_45 = arith.constant 12 : index
    %c0_46 = arith.constant 0 : index
    %151 = vector.load %arg11[%c12_45, %c0_46] : memref<16x32xf32, #tpu.memory_space<vmem>>, vector<2x32xf32>
    tpu.vector_store %arg11[%c12_45, %c0_46], %150 {strides = array<i32>} : memref<16x32xf32, #tpu.memory_space<vmem>>, vector<2x32xf32>,
    %c14 = arith.constant 14 : index
    %c0_47 = arith.constant 0 : index
    %152 = vector.load %arg10[%c14, %c0_47] : memref<16x128xf32, #tpu.memory_space<vmem>>, vector<2x128xf32>
    %153 = arith.truncf %150 : vector<2x32xf32> to vector<2x32xbf16>
    %cst_48 = arith.constant dense<0.000000e+00> : vector<2x128xf32>
    %154 = tpu.matmul %153, %23, %cst_48 {dimension_numbers = #tpu.dot_dimension_numbers<[1], [0], [0], [1], [0, 0, 1, 1], [], []>} : vector<2x32xbf16>, vector<32x128xbf16>, vector<2x128xf32> -> vector<2x128xf32>
    %155 = arith.addf %152, %154 : vector<2x128xf32>
    %156 = arith.mulf %155, %19 : vector<2x128xf32>
    %157 = math.tanh %156 : vector<2x128xf32>
    %158 = arith.mulf %157, %19 : vector<2x128xf32>
    %159 = arith.addf %158, %22 : vector<2x128xf32>
    %160 = vector.extract_strided_slice %159 {offsets = [0, 0], sizes = [2, 32], strides = [1, 1]} : vector<2x128xf32> to vector<2x32xf32>
    %161 = vector.extract_strided_slice %159 {offsets = [0, 32], sizes = [2, 32], strides = [1, 1]} : vector<2x128xf32> to vector<2x32xf32>
    %162 = vector.extract_strided_slice %159 {offsets = [0, 64], sizes = [2, 32], strides = [1, 1]} : vector<2x128xf32> to vector<2x32xf32>
    %163 = vector.extract_strided_slice %159 {offsets = [0, 96], sizes = [2, 32], strides = [1, 1]} : vector<2x128xf32> to vector<2x32xf32>
    %164 = arith.mulf %161, %148 : vector<2x32xf32>
    %165 = arith.mulf %160, %162 : vector<2x32xf32>
    %166 = arith.addf %164, %165 : vector<2x32xf32>
    %167 = math.tanh %166 : vector<2x32xf32>
    %168 = arith.mulf %163, %167 : vector<2x32xf32>
    %c14_49 = arith.constant 14 : index
    %c0_50 = arith.constant 0 : index
    %169 = vector.load %arg11[%c14_49, %c0_50] : memref<16x32xf32, #tpu.memory_space<vmem>>, vector<2x32xf32>
    tpu.vector_store %arg11[%c14_49, %c0_50], %168 {strides = array<i32>} : memref<16x32xf32, #tpu.memory_space<vmem>>, vector<2x32xf32>,
    %c0_51 = arith.constant 0 : index
    %c0_52 = arith.constant 0 : index
    %170 = vector.load %arg8[%c0_51, %c0_52] : memref<2x32xf32, #tpu.memory_space<vmem>>, vector<2x32xf32>
    tpu.vector_store %arg8[%c0_51, %c0_52], %168 {strides = array<i32>} : memref<2x32xf32, #tpu.memory_space<vmem>>, vector<2x32xf32>,
    %c0_53 = arith.constant 0 : index
    %c0_54 = arith.constant 0 : index
    %171 = vector.load %arg9[%c0_53, %c0_54] : memref<2x32xf32, #tpu.memory_space<vmem>>, vector<2x32xf32>
    tpu.vector_store %arg9[%c0_53, %c0_54], %166 {strides = array<i32>} : memref<2x32xf32, #tpu.memory_space<vmem>>, vector<2x32xf32>,
    %c0_55 = arith.constant 0 : index
    %c0_56 = arith.constant 0 : index
    %172 = vector.load %arg11[%c0_55, %c0_56] : memref<16x32xf32, #tpu.memory_space<vmem>>, vector<16x32xf32>
    %173 = arith.truncf %172 : vector<16x32xf32> to vector<16x32xbf16>
    %c0_57 = arith.constant 0 : index
    %c0_58 = arith.constant 0 : index
    %174 = vector.load %arg5[%c0_57, %c0_58] : memref<32x32xbf16, #tpu.memory_space<vmem>>, vector<32x32xbf16>
    %cst_59 = arith.constant dense<0.000000e+00> : vector<16x32xf32>
    %175 = tpu.matmul %173, %174, %cst_59 {dimension_numbers = #tpu.dot_dimension_numbers<[1], [0], [0], [1], [0, 0, 1, 1], [], []>} : vector<16x32xbf16>, vector<32x32xbf16>, vector<16x32xf32> -> vector<16x32xf32>
    %c0_60 = arith.constant 0 : index
    %c0_61 = arith.constant 0 : index
    %176 = vector.load %arg6[%c0_60, %c0_61] : memref<1x32xf32, #tpu.memory_space<vmem>>, vector<1x32xf32>
    %177 = vector.broadcast %176 : vector<1x32xf32> to vector<16x32xf32>
    %178 = arith.addf %175, %177 : vector<16x32xf32>
    %179 = math.tanh %178 : vector<16x32xf32>
    %c0_62 = arith.constant 0 : index
    %c0_63 = arith.constant 0 : index
    %180 = vector.load %arg7[%c0_62, %c0_63] : memref<16x32xf32, #tpu.memory_space<vmem>>, vector<16x32xf32>
    tpu.vector_store %arg7[%c0_62, %c0_63], %179 {strides = array<i32>} : memref<16x32xf32, #tpu.memory_space<vmem>>, vector<16x32xf32>,
    return
  }
  func.func @transform_0(%arg0: i32) -> (i32, i32) {
    %c0_i32 = arith.constant 0 : i32
    %c0_i32_0 = arith.constant 0 : i32
    return %arg0, %c0_i32 : i32, i32
  }
  func.func @transform_1(%arg0: i32) -> (i32, i32) {
    %c0_i32 = arith.constant 0 : i32
    %c0_i32_0 = arith.constant 0 : i32
    %c0_i32_1 = arith.constant 0 : i32
    return %c0_i32, %c0_i32_0 : i32, i32
  }
  func.func @transform_2(%arg0: i32) -> (i32, i32) {
    %c0_i32 = arith.constant 0 : i32
    %c0_i32_0 = arith.constant 0 : i32
    %c0_i32_1 = arith.constant 0 : i32
    return %c0_i32, %c0_i32_0 : i32, i32
  }
  func.func @transform_3(%arg0: i32) -> (i32, i32) {
    %c0_i32 = arith.constant 0 : i32
    %c0_i32_0 = arith.constant 0 : i32
    %c0_i32_1 = arith.constant 0 : i32
    return %c0_i32, %c0_i32_0 : i32, i32
  }
  func.func @transform_4(%arg0: i32) -> (i32, i32) {
    %c0_i32 = arith.constant 0 : i32
    %c0_i32_0 = arith.constant 0 : i32
    %c0_i32_1 = arith.constant 0 : i32
    return %c0_i32, %c0_i32_0 : i32, i32
  }
  func.func @transform_5(%arg0: i32) -> (i32, i32) {
    %c0_i32 = arith.constant 0 : i32
    %c0_i32_0 = arith.constant 0 : i32
    %c0_i32_1 = arith.constant 0 : i32
    return %c0_i32, %c0_i32_0 : i32, i32
  }
  func.func @transform_6(%arg0: i32) -> (i32, i32) {
    %c0_i32 = arith.constant 0 : i32
    %c0_i32_0 = arith.constant 0 : i32
    return %arg0, %c0_i32 : i32, i32
  }
}

</mosaic_0001>

<llo_original>
// kernel: tpu_custom_call.1
$region0: #{tpu_custom_call.1}
  #allocation0 [shape = 'u32[]', space=smem, size = 0x4, offset = 0x4, fixed_abs, tag = 'smem constant byte address 0x4 - core index']
  #allocation1 [shape = 'u32[144,128]{1,0:T(1,128)}', space=vmem, size = 0x12000, scoped, tag = 'internal scratch']
  #allocation2 [shape = 'f32[2,32]{1,0:T(2,128)}', space=vmem, size = 0x400, scoped, tag = 'scratch operand']
  #allocation3 [shape = 'f32[2,32]{1,0:T(2,128)}', space=vmem, size = 0x400, scoped, tag = 'scratch operand']
  #allocation4 [shape = 'f32[16,128]{1,0:T(8,128)}', space=vmem, size = 0x2000, scoped, tag = 'scratch operand']
  #allocation5 [shape = 'f32[16,32]{1,0:T(8,128)}', space=vmem, size = 0x2000, scoped, tag = 'scratch operand']
  %s0 = inlined_call_operand.hbm [shape: f32[16,16], index: 0, kind: input, shape index: {}]
  %s1 = inlined_call_operand.hbm [shape: bf16[16,128], index: 1, kind: input, shape index: {}]
  %s2 = inlined_call_operand.hbm [shape: bf16[32,128], index: 2, kind: input, shape index: {}]
  %s3 = inlined_call_operand.vmem [shape: f32[1,128], index: 3, kind: input, shape index: {}]
  %s4 = inlined_call_operand.hbm [shape: bf16[32,32], index: 4, kind: input, shape index: {}]
  %s5 = inlined_call_operand.vmem [shape: f32[1,32], index: 5, kind: input, shape index: {}]
  %s6 = inlined_call_operand.hbm [shape: f32[16,32], index: 6, kind: output, shape index: {}]
  %s7 = sld [smem:[#allocation0]]
  $region54: #{tpu_custom_call.1} parent=0
    _
  %s9 = ssub.s32 1, %s7
  %s10 = scalar_select 0, %s9, %s7
  $region1: #{tpu_custom_call.1} parent=0
    #allocation6 [shape = 'u8[8192]{0}', space=vmem, size = 0x2000, scoped, tag = 'input window, operand 0, single buffered']
    #allocation7 [shape = 's32[1]{0}', space=sflag, size = 0x4, scoped, tag = 'scoped memory for tpu_custom_call.1']
    #allocation8 [shape = 's32[1]{0}', space=sflag, size = 0x4, scoped, tag = 'scoped memory for tpu_custom_call.1']
    #allocation9 [shape = 'u8[4096]{0}', space=vmem, size = 0x1000, scoped, tag = 'input window, operand 1, single buffered']
    #allocation10 [shape = 's32[1]{0}', space=sflag, size = 0x4, scoped, tag = 'scoped memory for tpu_custom_call.1']
    #allocation11 [shape = 'u8[8192]{0}', space=vmem, size = 0x2000, scoped, tag = 'input window, operand 2, single buffered']
    #allocation12 [shape = 'u8[8192]{0}', space=vmem, size = 0x2000, scoped, tag = 'input window, operand 4, single buffered']
    #allocation13 [shape = 's32[1]{0}', space=sflag, size = 0x4, scoped, tag = 'scoped memory for tpu_custom_call.1']
    #allocation14 [shape = 'u8[8192]{0}', space=vmem, size = 0x2000, scoped, tag = 'output window, operand 0, single buffered']
    %11 = vsyncpa [#allocation7], 0
    %12 = vsyncpa [#allocation10], 0
    %13 = vsyncpa [#allocation13], 0
    %14 = vsyncpa [#allocation8], 0
    // Predicated region
    $region2: #{tpu_custom_call.1} parent=1 // pred_check
      _
    $region3: #{tpu_custom_call.1} parent=1 // pred_check_branch
      %16 = sbr.rel (0) target = $region5
    $region4: #{tpu_custom_call.1} parent=1 // pred_region
      %s18 = ssub.s32 256, 256
      %19 = vsyncadd [#allocation7], %s18
      %s20 = sshll.u32 [#allocation6], 4
      %s21 = int_to_ptr.vmem [resolvable:$true] %s20
      %26 = dma.hbm_to_vmem [thread:$0]  %s0, 256, %s21, [#allocation7], 128, 128, 8
    $region5: #{tpu_custom_call.1} parent=1 // pred_fallthru
      _
    // Predicated region
    $region6: #{tpu_custom_call.1} parent=1 // pred_check
      _
    $region7: #{tpu_custom_call.1} parent=1 // pred_check_branch
      %28 = sbr.rel (0) target = $region9
    $region8: #{tpu_custom_call.1} parent=1 // pred_region
      %s30 = ssub.s32 128, 128
      %31 = vsyncadd [#allocation10], %s30
      %s32 = sshll.u32 [#allocation9], 4
      %s33 = int_to_ptr.vmem [resolvable:$true] %s32
      %38 = dma.hbm_to_vmem [thread:$0]  %s1, 128, %s33, [#allocation10], 64, 64, 4
    $region9: #{tpu_custom_call.1} parent=1 // pred_fallthru
      _
    // Predicated region
    $region10: #{tpu_custom_call.1} parent=1 // pred_check
      _
    $region11: #{tpu_custom_call.1} parent=1 // pred_check_branch
      %40 = sbr.rel (0) target = $region13
    $region12: #{tpu_custom_call.1} parent=1 // pred_region
      %s42 = ssub.s32 256, 256
      %43 = vsyncadd [#allocation10], %s42
      %s44 = sshll.u32 [#allocation11], 4
      %s45 = int_to_ptr.vmem [resolvable:$true] %s44
      %50 = dma.hbm_to_vmem [thread:$0]  %s2, 256, %s45, [#allocation10], 64, 64, 4
    $region13: #{tpu_custom_call.1} parent=1 // pred_fallthru
      _
    // Predicated region
    $region14: #{tpu_custom_call.1} parent=1 // pred_check
      _
    $region15: #{tpu_custom_call.1} parent=1 // pred_check_branch
      %52 = sbr.rel (0) target = $region17
    $region16: #{tpu_custom_call.1} parent=1 // pred_region
      _
    $region17: #{tpu_custom_call.1} parent=1 // pred_fallthru
      _
    // Predicated region
    $region18: #{tpu_custom_call.1} parent=1 // pred_check
      _
    $region19: #{tpu_custom_call.1} parent=1 // pred_check_branch
      %54 = sbr.rel (0) target = $region21
    $region20: #{tpu_custom_call.1} parent=1 // pred_region
      %s56 = ssub.s32 256, 256
      %57 = vsyncadd [#allocation13], %s56
      %s58 = sshll.u32 [#allocation12], 4
      %s59 = int_to_ptr.vmem [resolvable:$true] %s58
      %64 = dma.hbm_to_vmem [thread:$0]  %s4, 256, %s59, [#allocation13], 64, 64, 4
    $region21: #{tpu_custom_call.1} parent=1 // pred_fallthru
      _
    // Predicated region
    $region22: #{tpu_custom_call.1} parent=1 // pred_check
      _
    $region23: #{tpu_custom_call.1} parent=1 // pred_check_branch
      %66 = sbr.rel (0) target = $region25
    $region24: #{tpu_custom_call.1} parent=1 // pred_region
      _
    $region25: #{tpu_custom_call.1} parent=1 // pred_fallthru
      _
    // Predicated region
    $region26: #{tpu_custom_call.1} parent=1 // pred_check
      _
    $region27: #{tpu_custom_call.1} parent=1 // pred_check_branch
      %68 = sbr.rel (0) target = $region29
    $region28: #{tpu_custom_call.1} parent=1 // pred_region
      %69 = dma.done [#allocation7], 256
    $region29: #{tpu_custom_call.1} parent=1 // pred_fallthru
      _
    // Predicated region
    $region30: #{tpu_custom_call.1} parent=1 // pred_check
      _
    $region31: #{tpu_custom_call.1} parent=1 // pred_check_branch
      %71 = sbr.rel (0) target = $region33
    $region32: #{tpu_custom_call.1} parent=1 // pred_region
      %72 = dma.done [#allocation10], 128
    $region33: #{tpu_custom_call.1} parent=1 // pred_fallthru
      _
    // Predicated region
    $region34: #{tpu_custom_call.1} parent=1 // pred_check
      _
    $region35: #{tpu_custom_call.1} parent=1 // pred_check_branch
      %74 = sbr.rel (0) target = $region37
    $region36: #{tpu_custom_call.1} parent=1 // pred_region
      %75 = dma.done [#allocation10], 256
    $region37: #{tpu_custom_call.1} parent=1 // pred_fallthru
      _
    // Predicated region
    $region38: #{tpu_custom_call.1} parent=1 // pred_check
      _
    $region39: #{tpu_custom_call.1} parent=1 // pred_check_branch
      %77 = sbr.rel (0) target = $region41
    $region40: #{tpu_custom_call.1} parent=1 // pred_region
      %78 = dma.done [#allocation13], 256
    $region41: #{tpu_custom_call.1} parent=1 // pred_fallthru
      _
    %p80 = scmp.eq.s32.totalorder 0, 0
    // Predicated region
    $region42: #{tpu_custom_call.1} parent=1 // pred_check
      %p81 = pneg %p80
    $region43: #{tpu_custom_call.1} parent=1 // pred_check_branch
      %83 = sbr.rel (%p81) target = $region45
    $region44: #{tpu_custom_call.1} parent=1 // pred_region
      %vm84 = vcmask 254976
      %85 = vst.msk [vmem:[#allocation2] sm:$0x3] %vm84, 0.0
      %86 = vst.msk [vmem:[#allocation3] sm:$0x3] %vm84, 0.0
    $region45: #{tpu_custom_call.1} parent=1 // pred_fallthru
      _
    %v87 = vld [vmem:[#allocation6] sm:$0xff]
    %v88 = vld [vmem:[#allocation6 + $0x8] sm:$0xff]
    %v89 = vpack.c.bf16 %v88, %v87
    %v90 = vld [vmem:[#allocation9] sm:$0xf]
    %v91 = vld [vmem:[#allocation9 + $0x4] sm:$0xf]
    %v92 = vld [vmem:[%s3] sm:$0x1]
    %v94 = vlaneseq
    %v95 = vshrl.u32 %v94, 7
    %v96 = vsub.s32 0, %v95
    %v97 = vrot.slane %v92, %v96
    %v101 = vunpack.c.l.b16 %v90
    %v102 = vunpack.c.l.b16 %v91
    %v103 = vpack.c.b16 %v102, %v101
    %vm105 = vcmask 130048
    %v107 = vsel %vm105, %v89, 0
    %109 = vmatprep.subr.bf16.mxu0 0
    %110 = vmatpush1.bf16.msra.mxu0 %v103
    %111 = vmatprep.subr.bf16.mxu0 0
    %112 = vmatpush1.bf16.msra.mxu0 0
    %113 = vmatprep.subr.bf16.mxu0 0
    %114 = vmatpush1.bf16.msra.mxu0 0
    %115 = vmatprep.subr.bf16.mxu0 0
    %116 = vmatpush1.bf16.msra.mxu0 0
    %117 = vmatprep.subr.bf16.mxu0 0
    %118 = vmatpush1.bf16.msra.mxu0 0
    %119 = vmatprep.subr.bf16.mxu0 0
    %120 = vmatpush1.bf16.msra.mxu0 0
    %121 = vmatprep.subr.bf16.mxu0 0
    %122 = vmatpush1.bf16.msra.mxu0 0
    %123 = vmatprep.subr.bf16.mxu0 0
    %124 = vmatpush1.bf16.msra.mxu0 0
    %125 = vmatprep.subr.bf16.mxu0 0
    %126 = vmatpush1.bf16.msra.mxu0 0
    %127 = vmatprep.subr.bf16.mxu0 0
    %128 = vmatpush1.bf16.msra.mxu0 0
    %129 = vmatprep.subr.bf16.mxu0 0
    %130 = vmatpush1.bf16.msra.mxu0 0
    %131 = vmatprep.subr.bf16.mxu0 0
    %132 = vmatpush1.bf16.msra.mxu0 0
    %133 = vmatprep.subr.bf16.mxu0 0
    %134 = vmatpush1.bf16.msra.mxu0 0
    %135 = vmatprep.subr.bf16.mxu0 0
    %136 = vmatpush1.bf16.msra.mxu0 0
    %137 = vmatprep.subr.bf16.mxu0 0
    %138 = vmatpush1.bf16.msra.mxu0 0
    %139 = vmatprep.subr.bf16.mxu0 0
    %140 = vmatpush1.bf16.msra.mxu0 0
    %141 = vmatprep.mubr.bf16.mxu0 0
    %142 = vmatmul.mubr.bf16.gmra.mrb[0].mxu0 %v107
    %v143 = vpop.f32.mrb[0].mxu0
    %v144 = vadd.f32 %v97, %v143
    %v145 = vpop.f32.mrb[0].mxu0
    %v146 = vpop.f32.mrb[0].mxu0
    %v147 = vadd.f32 %v97, %v146
    %v148 = vpop.f32.mrb[0].mxu0
    %149 = vdwg.mxu0
    %150 = vst [vmem:[#allocation4] sm:$0xff] %v144
    %151 = vst [vmem:[#allocation4 + $0x8] sm:$0xff] %v147
    %v152 = vlaneseq
    %v153 = vand.u32 %v152, 127
    %vm154 = vcmp.ge.s32.totalorder %v153, 64
    %vm155 = vcmp.lt.s32.totalorder %v153, 96
    %vm156 = vmand %vm154, %vm155
    %v157 = vsel %vm156, 1.0, 0.5
    %v158 = vsel %vm156, 0.0, 0.5
    %v159 = vld [vmem:[#allocation11] sm:$0xf]
    %v160 = vld [vmem:[#allocation11 + $0x4] sm:$0xf]
    %v161 = vld [vmem:[#allocation11 + $0x8] sm:$0xf]
    %v162 = vld [vmem:[#allocation11 + $0xc] sm:$0xf]
    %v163 = vld [vmem:[#allocation2] sm:$0x3]
    %v164 = vld [vmem:[#allocation3] sm:$0x3]
    %v165 = vld [vmem:[#allocation4] sm:$0x3]
    %v166 = vpack.c.bf16 %v163, %v163
    %v171 = vunpack.c.l.b16 %v159
    %v172 = vunpack.c.l.b16 %v160
    %v173 = vunpack.c.l.b16 %v161
    %v174 = vunpack.c.l.b16 %v162
    %v175 = vpack.c.b16 %v172, %v171
    %v176 = vpack.c.b16 %v174, %v173
    %vm179 = vcmask 261120
    %v181 = vsel %vm179, %v166, 0
    %183 = vmatprep.subr.bf16.mxu0 0
    %184 = vmatpush1.bf16.msra.mxu0 %v175
    %185 = vmatprep.subr.bf16.mxu0 0
    %186 = vmatpush1.bf16.msra.mxu0 %v176
    %187 = vmatprep.subr.bf16.mxu0 0
    %188 = vmatpush1.bf16.msra.mxu0 0
    %189 = vmatprep.subr.bf16.mxu0 0
    %190 = vmatpush1.bf16.msra.mxu0 0
    %191 = vmatprep.subr.bf16.mxu0 0
    %192 = vmatpush1.bf16.msra.mxu0 0
    %193 = vmatprep.subr.bf16.mxu0 0
    %194 = vmatpush1.bf16.msra.mxu0 0
    %195 = vmatprep.subr.bf16.mxu0 0
    %196 = vmatpush1.bf16.msra.mxu0 0
    %197 = vmatprep.subr.bf16.mxu0 0
    %198 = vmatpush1.bf16.msra.mxu0 0
    %199 = vmatprep.subr.bf16.mxu0 0
    %200 = vmatpush1.bf16.msra.mxu0 0
    %201 = vmatprep.subr.bf16.mxu0 0
    %202 = vmatpush1.bf16.msra.mxu0 0
    %203 = vmatprep.subr.bf16.mxu0 0
    %204 = vmatpush1.bf16.msra.mxu0 0
    %205 = vmatprep.subr.bf16.mxu0 0
    %206 = vmatpush1.bf16.msra.mxu0 0
    %207 = vmatprep.subr.bf16.mxu0 0
    %208 = vmatpush1.bf16.msra.mxu0 0
    %209 = vmatprep.subr.bf16.mxu0 0
    %210 = vmatpush1.bf16.msra.mxu0 0
    %211 = vmatprep.subr.bf16.mxu0 0
    %212 = vmatpush1.bf16.msra.mxu0 0
    %213 = vmatprep.subr.bf16.mxu0 0
    %214 = vmatpush1.bf16.msra.mxu0 0
    %215 = vmatprep.mubr.bf16.mxu0 0
    %216 = vmatmul.mubr.bf16.gmra.mrb[0].mxu0 %v181
    %v217 = vpop.f32.mrb[0].mxu0
    %v218 = vadd.f32 0.0, %v217
    %v219 = vpop.f32.mrb[0].mxu0
    %v220 = vpop.f32.mrb[0].mxu0
    %v221 = vpop.f32.mrb[0].mxu0
    %222 = vdwg.mxu0
    %v223 = vadd.f32 %v165, %v218
    %v224 = vmul.f32 %v223, %v157
    %v225 = vtanh.pop %v224
    %v226 = vmul.f32 %v225, %v157
    %v227 = vadd.f32 %v226, %v158
    %229 = vrot.lane.b32.xlu0 %v164, 32
    %v230 = vpop.permute.xlu0 %229
    %v232 = vmul.f32 %v227, %v230
    %234 = vrot.lane.b32.xlu0 %v227, 64
    %v235 = vpop.permute.xlu0 %234
    %v237 = vmul.f32 %v227, %v235
    %239 = vrot.lane.b32.xlu0 %v237, 32
    %v240 = vpop.permute.xlu0 %239
    %v242 = vadd.f32 %v232, %v240
    %v243 = vtanh.pop %v242
    %245 = vrot.lane.b32.xlu0 %v243, 64
    %v246 = vpop.permute.xlu0 %245
    %v248 = vmul.f32 %v227, %v246
    %250 = vrot.lane.b32.xlu0 %v248, 32
    %v251 = vpop.permute.xlu0 %250
    %vm253 = vcmask 254976
    %254 = vst.msk [vmem:[#allocation5] sm:$0x3] %vm253, %v251
    %v255 = vld [vmem:[#allocation4 + $0x2] sm:$0x3]
    %v256 = vpack.c.bf16 %v248, %v248
    %258 = vrot.lane.b32.xlu0 %v256, 32
    %v259 = vpop.permute.xlu0 %258
    %v261 = vsel %vm179, %v259, 0
    %263 = vmatprep.subr.bf16.mxu0 0
    %264 = vmatpush1.bf16.msra.mxu0 %v175
    %265 = vmatprep.subr.bf16.mxu0 0
    %266 = vmatpush1.bf16.msra.mxu0 %v176
    %267 = vmatprep.subr.bf16.mxu0 0
    %268 = vmatpush1.bf16.msra.mxu0 0
    %269 = vmatprep.subr.bf16.mxu0 0
    %270 = vmatpush1.bf16.msra.mxu0 0
    %271 = vmatprep.subr.bf16.mxu0 0
    %272 = vmatpush1.bf16.msra.mxu0 0
    %273 = vmatprep.subr.bf16.mxu0 0
    %274 = vmatpush1.bf16.msra.mxu0 0
    %275 = vmatprep.subr.bf16.mxu0 0
    %276 = vmatpush1.bf16.msra.mxu0 0
    %277 = vmatprep.subr.bf16.mxu0 0
    %278 = vmatpush1.bf16.msra.mxu0 0
    %279 = vmatprep.subr.bf16.mxu0 0
    %280 = vmatpush1.bf16.msra.mxu0 0
    %281 = vmatprep.subr.bf16.mxu0 0
    %282 = vmatpush1.bf16.msra.mxu0 0
    %283 = vmatprep.subr.bf16.mxu0 0
    %284 = vmatpush1.bf16.msra.mxu0 0
    %285 = vmatprep.subr.bf16.mxu0 0
    %286 = vmatpush1.bf16.msra.mxu0 0
    %287 = vmatprep.subr.bf16.mxu0 0
    %288 = vmatpush1.bf16.msra.mxu0 0
    %289 = vmatprep.subr.bf16.mxu0 0
    %290 = vmatpush1.bf16.msra.mxu0 0
    %291 = vmatprep.subr.bf16.mxu0 0
    %292 = vmatpush1.bf16.msra.mxu0 0
    %293 = vmatprep.subr.bf16.mxu0 0
    %294 = vmatpush1.bf16.msra.mxu0 0
    %295 = vmatprep.mubr.bf16.mxu0 0
    %296 = vmatmul.mubr.bf16.gmra.mrb[0].mxu0 %v261
    %v297 = vpop.f32.mrb[0].mxu0
    %v298 = vadd.f32 0.0, %v297
    %v299 = vpop.f32.mrb[0].mxu0
    %v300 = vpop.f32.mrb[0].mxu0
    %v301 = vpop.f32.mrb[0].mxu0
    %302 = vdwg.mxu0
    %v303 = vadd.f32 %v255, %v298
    %v304 = vmul.f32 %v303, %v157
    %v305 = vtanh.pop %v304
    %v306 = vmul.f32 %v305, %v157
    %v307 = vadd.f32 %v306, %v158
    %v308 = vmul.f32 %v307, %v242
    %310 = vrot.lane.b32.xlu0 %v307, 64
    %v311 = vpop.permute.xlu0 %310
    %v313 = vmul.f32 %v307, %v311
    %315 = vrot.lane.b32.xlu0 %v313, 32
    %v316 = vpop.permute.xlu0 %315
    %v318 = vadd.f32 %v308, %v316
    %v319 = vtanh.pop %v318
    %321 = vrot.lane.b32.xlu0 %v319, 64
    %v322 = vpop.permute.xlu0 %321
    %v324 = vmul.f32 %v307, %v322
    %326 = vrot.lane.b32.xlu0 %v324, 32
    %v327 = vpop.permute.xlu0 %326
    %329 = vst.msk [vmem:[#allocation5 + $0x2] sm:$0x3] %vm253, %v327
    %v330 = vld [vmem:[#allocation4 + $0x4] sm:$0x3]
    %v331 = vpack.c.bf16 %v324, %v324
    %333 = vrot.lane.b32.xlu0 %v331, 32
    %v334 = vpop.permute.xlu0 %333
    %v336 = vsel %vm179, %v334, 0
    %338 = vmatprep.subr.bf16.mxu0 0
    %339 = vmatpush1.bf16.msra.mxu0 %v175
    %340 = vmatprep.subr.bf16.mxu0 0
    %341 = vmatpush1.bf16.msra.mxu0 %v176
    %342 = vmatprep.subr.bf16.mxu0 0
    %343 = vmatpush1.bf16.msra.mxu0 0
    %344 = vmatprep.subr.bf16.mxu0 0
    %345 = vmatpush1.bf16.msra.mxu0 0
    %346 = vmatprep.subr.bf16.mxu0 0
    %347 = vmatpush1.bf16.msra.mxu0 0
    %348 = vmatprep.subr.bf16.mxu0 0
    %349 = vmatpush1.bf16.msra.mxu0 0
    %350 = vmatprep.subr.bf16.mxu0 0
    %351 = vmatpush1.bf16.msra.mxu0 0
    %352 = vmatprep.subr.bf16.mxu0 0
    %353 = vmatpush1.bf16.msra.mxu0 0
    %354 = vmatprep.subr.bf16.mxu0 0
    %355 = vmatpush1.bf16.msra.mxu0 0
    %356 = vmatprep.subr.bf16.mxu0 0
    %357 = vmatpush1.bf16.msra.mxu0 0
    %358 = vmatprep.subr.bf16.mxu0 0
    %359 = vmatpush1.bf16.msra.mxu0 0
    %360 = vmatprep.subr.bf16.mxu0 0
    %361 = vmatpush1.bf16.msra.mxu0 0
    %362 = vmatprep.subr.bf16.mxu0 0
    %363 = vmatpush1.bf16.msra.mxu0 0
    %364 = vmatprep.subr.bf16.mxu0 0
    %365 = vmatpush1.bf16.msra.mxu0 0
    %366 = vmatprep.subr.bf16.mxu0 0
    %367 = vmatpush1.bf16.msra.mxu0 0
    %368 = vmatprep.subr.bf16.mxu0 0
    %369 = vmatpush1.bf16.msra.mxu0 0
    %370 = vmatprep.mubr.bf16.mxu0 0
    %371 = vmatmul.mubr.bf16.gmra.mrb[0].mxu0 %v336
    %v372 = vpop.f32.mrb[0].mxu0
    %v373 = vadd.f32 0.0, %v372
    %v374 = vpop.f32.mrb[0].mxu0
    %v375 = vpop.f32.mrb[0].mxu0
    %v376 = vpop.f32.mrb[0].mxu0
    %377 = vdwg.mxu0
    %v378 = vadd.f32 %v330, %v373
    %v379 = vmul.f32 %v378, %v157
    %v380 = vtanh.pop %v379
    %v381 = vmul.f32 %v380, %v157
    %v382 = vadd.f32 %v381, %v158
    %v383 = vmul.f32 %v382, %v318
    %385 = vrot.lane.b32.xlu0 %v382, 64
    %v386 = vpop.permute.xlu0 %385
    %v388 = vmul.f32 %v382, %v386
    %390 = vrot.lane.b32.xlu0 %v388, 32
    %v391 = vpop.permute.xlu0 %390
    %v393 = vadd.f32 %v383, %v391
    %v394 = vtanh.pop %v393
    %396 = vrot.lane.b32.xlu0 %v394, 64
    %v397 = vpop.permute.xlu0 %396
    %v399 = vmul.f32 %v382, %v397
    %401 = vrot.lane.b32.xlu0 %v399, 32
    %v402 = vpop.permute.xlu0 %401
    %404 = vst.msk [vmem:[#allocation5 + $0x4] sm:$0x3] %vm253, %v402
    %v405 = vld [vmem:[#allocation4 + $0x6] sm:$0x3]
    %v406 = vpack.c.bf16 %v399, %v399
    %408 = vrot.lane.b32.xlu0 %v406, 32
    %v409 = vpop.permute.xlu0 %408
    %v411 = vsel %vm179, %v409, 0
    %413 = vmatprep.subr.bf16.mxu0 0
    %414 = vmatpush1.bf16.msra.mxu0 %v175
    %415 = vmatprep.subr.bf16.mxu0 0
    %416 = vmatpush1.bf16.msra.mxu0 %v176
    %417 = vmatprep.subr.bf16.mxu0 0
    %418 = vmatpush1.bf16.msra.mxu0 0
    %419 = vmatprep.subr.bf16.mxu0 0
    %420 = vmatpush1.bf16.msra.mxu0 0
    %421 = vmatprep.subr.bf16.mxu0 0
    %422 = vmatpush1.bf16.msra.mxu0 0
    %423 = vmatprep.subr.bf16.mxu0 0
    %424 = vmatpush1.bf16.msra.mxu0 0
    %425 = vmatprep.subr.bf16.mxu0 0
    %426 = vmatpush1.bf16.msra.mxu0 0
    %427 = vmatprep.subr.bf16.mxu0 0
    %428 = vmatpush1.bf16.msra.mxu0 0
    %429 = vmatprep.subr.bf16.mxu0 0
    %430 = vmatpush1.bf16.msra.mxu0 0
    %431 = vmatprep.subr.bf16.mxu0 0
    %432 = vmatpush1.bf16.msra.mxu0 0
    %433 = vmatprep.subr.bf16.mxu0 0
    %434 = vmatpush1.bf16.msra.mxu0 0
    %435 = vmatprep.subr.bf16.mxu0 0
    %436 = vmatpush1.bf16.msra.mxu0 0
    %437 = vmatprep.subr.bf16.mxu0 0
    %438 = vmatpush1.bf16.msra.mxu0 0
    %439 = vmatprep.subr.bf16.mxu0 0
    %440 = vmatpush1.bf16.msra.mxu0 0
    %441 = vmatprep.subr.bf16.mxu0 0
    %442 = vmatpush1.bf16.msra.mxu0 0
    %443 = vmatprep.subr.bf16.mxu0 0
    %444 = vmatpush1.bf16.msra.mxu0 0
    %445 = vmatprep.mubr.bf16.mxu0 0
    %446 = vmatmul.mubr.bf16.gmra.mrb[0].mxu0 %v411
    %v447 = vpop.f32.mrb[0].mxu0
    %v448 = vadd.f32 0.0, %v447
    %v449 = vpop.f32.mrb[0].mxu0
    %v450 = vpop.f32.mrb[0].mxu0
    %v451 = vpop.f32.mrb[0].mxu0
    %452 = vdwg.mxu0
    %v453 = vadd.f32 %v405, %v448
    %v454 = vmul.f32 %v453, %v157
    %v455 = vtanh.pop %v454
    %v456 = vmul.f32 %v455, %v157
    %v457 = vadd.f32 %v456, %v158
    %v458 = vmul.f32 %v457, %v393
    %460 = vrot.lane.b32.xlu0 %v457, 64
    %v461 = vpop.permute.xlu0 %460
    %v463 = vmul.f32 %v457, %v461
    %465 = vrot.lane.b32.xlu0 %v463, 32
    %v466 = vpop.permute.xlu0 %465
    %v468 = vadd.f32 %v458, %v466
    %v469 = vtanh.pop %v468
    %471 = vrot.lane.b32.xlu0 %v469, 64
    %v472 = vpop.permute.xlu0 %471
    %v474 = vmul.f32 %v457, %v472
    %476 = vrot.lane.b32.xlu0 %v474, 32
    %v477 = vpop.permute.xlu0 %476
    %479 = vst.msk [vmem:[#allocation5 + $0x6] sm:$0x3] %vm253, %v477
    %v480 = vld [vmem:[#allocation4 + $0x8] sm:$0x3]
    %v481 = vpack.c.bf16 %v474, %v474
    %483 = vrot.lane.b32.xlu0 %v481, 32
    %v484 = vpop.permute.xlu0 %483
    %v486 = vsel %vm179, %v484, 0
    %488 = vmatprep.subr.bf16.mxu0 0
    %489 = vmatpush1.bf16.msra.mxu0 %v175
    %490 = vmatprep.subr.bf16.mxu0 0
    %491 = vmatpush1.bf16.msra.mxu0 %v176
    %492 = vmatprep.subr.bf16.mxu0 0
    %493 = vmatpush1.bf16.msra.mxu0 0
    %494 = vmatprep.subr.bf16.mxu0 0
    %495 = vmatpush1.bf16.msra.mxu0 0
    %496 = vmatprep.subr.bf16.mxu0 0
    %497 = vmatpush1.bf16.msra.mxu0 0
    %498 = vmatprep.subr.bf16.mxu0 0
    %499 = vmatpush1.bf16.msra.mxu0 0
    %500 = vmatprep.subr.bf16.mxu0 0
    %501 = vmatpush1.bf16.msra.mxu0 0
    %502 = vmatprep.subr.bf16.mxu0 0
    %503 = vmatpush1.bf16.msra.mxu0 0
    %504 = vmatprep.subr.bf16.mxu0 0
    %505 = vmatpush1.bf16.msra.mxu0 0
    %506 = vmatprep.subr.bf16.mxu0 0
    %507 = vmatpush1.bf16.msra.mxu0 0
    %508 = vmatprep.subr.bf16.mxu0 0
    %509 = vmatpush1.bf16.msra.mxu0 0
    %510 = vmatprep.subr.bf16.mxu0 0
    %511 = vmatpush1.bf16.msra.mxu0 0
    %512 = vmatprep.subr.bf16.mxu0 0
    %513 = vmatpush1.bf16.msra.mxu0 0
    %514 = vmatprep.subr.bf16.mxu0 0
    %515 = vmatpush1.bf16.msra.mxu0 0
    %516 = vmatprep.subr.bf16.mxu0 0
    %517 = vmatpush1.bf16.msra.mxu0 0
    %518 = vmatprep.subr.bf16.mxu0 0
    %519 = vmatpush1.bf16.msra.mxu0 0
    %520 = vmatprep.mubr.bf16.mxu0 0
    %521 = vmatmul.mubr.bf16.gmra.mrb[0].mxu0 %v486
    %v522 = vpop.f32.mrb[0].mxu0
    %v523 = vadd.f32 0.0, %v522
    %v524 = vpop.f32.mrb[0].mxu0
    %v525 = vpop.f32.mrb[0].mxu0
    %v526 = vpop.f32.mrb[0].mxu0
    %527 = vdwg.mxu0
    %v528 = vadd.f32 %v480, %v523
    %v529 = vmul.f32 %v528, %v157
    %v530 = vtanh.pop %v529
    %v531 = vmul.f32 %v530, %v157
    %v532 = vadd.f32 %v531, %v158
    %v533 = vmul.f32 %v532, %v468
    %535 = vrot.lane.b32.xlu0 %v532, 64
    %v536 = vpop.permute.xlu0 %535
    %v538 = vmul.f32 %v532, %v536
    %540 = vrot.lane.b32.xlu0 %v538, 32
    %v541 = vpop.permute.xlu0 %540
    %v543 = vadd.f32 %v533, %v541
    %v544 = vtanh.pop %v543
    %546 = vrot.lane.b32.xlu0 %v544, 64
    %v547 = vpop.permute.xlu0 %546
    %v549 = vmul.f32 %v532, %v547
    %551 = vrot.lane.b32.xlu0 %v549, 32
    %v552 = vpop.permute.xlu0 %551
    %554 = vst.msk [vmem:[#allocation5 + $0x8] sm:$0x3] %vm253, %v552
    %v555 = vld [vmem:[#allocation4 + $0xa] sm:$0x3]
    %v556 = vpack.c.bf16 %v549, %v549
    %558 = vrot.lane.b32.xlu0 %v556, 32
    %v559 = vpop.permute.xlu0 %558
    %v561 = vsel %vm179, %v559, 0
    %563 = vmatprep.subr.bf16.mxu0 0
    %564 = vmatpush1.bf16.msra.mxu0 %v175
    %565 = vmatprep.subr.bf16.mxu0 0
    %566 = vmatpush1.bf16.msra.mxu0 %v176
    %567 = vmatprep.subr.bf16.mxu0 0
    %568 = vmatpush1.bf16.msra.mxu0 0
    %569 = vmatprep.subr.bf16.mxu0 0
    %570 = vmatpush1.bf16.msra.mxu0 0
    %571 = vmatprep.subr.bf16.mxu0 0
    %572 = vmatpush1.bf16.msra.mxu0 0
    %573 = vmatprep.subr.bf16.mxu0 0
    %574 = vmatpush1.bf16.msra.mxu0 0
    %575 = vmatprep.subr.bf16.mxu0 0
    %576 = vmatpush1.bf16.msra.mxu0 0
    %577 = vmatprep.subr.bf16.mxu0 0
    %578 = vmatpush1.bf16.msra.mxu0 0
    %579 = vmatprep.subr.bf16.mxu0 0
    %580 = vmatpush1.bf16.msra.mxu0 0
    %581 = vmatprep.subr.bf16.mxu0 0
    %582 = vmatpush1.bf16.msra.mxu0 0
    %583 = vmatprep.subr.bf16.mxu0 0
    %584 = vmatpush1.bf16.msra.mxu0 0
    %585 = vmatprep.subr.bf16.mxu0 0
    %586 = vmatpush1.bf16.msra.mxu0 0
    %587 = vmatprep.subr.bf16.mxu0 0
    %588 = vmatpush1.bf16.msra.mxu0 0
    %589 = vmatprep.subr.bf16.mxu0 0
    %590 = vmatpush1.bf16.msra.mxu0 0
    %591 = vmatprep.subr.bf16.mxu0 0
    %592 = vmatpush1.bf16.msra.mxu0 0
    %593 = vmatprep.subr.bf16.mxu0 0
    %594 = vmatpush1.bf16.msra.mxu0 0
    %595 = vmatprep.mubr.bf16.mxu0 0
    %596 = vmatmul.mubr.bf16.gmra.mrb[0].mxu0 %v561
    %v597 = vpop.f32.mrb[0].mxu0
    %v598 = vadd.f32 0.0, %v597
    %v599 = vpop.f32.mrb[0].mxu0
    %v600 = vpop.f32.mrb[0].mxu0
    %v601 = vpop.f32.mrb[0].mxu0
    %602 = vdwg.mxu0
    %v603 = vadd.f32 %v555, %v598
    %v604 = vmul.f32 %v603, %v157
    %v605 = vtanh.pop %v604
    %v606 = vmul.f32 %v605, %v157
    %v607 = vadd.f32 %v606, %v158
    %v608 = vmul.f32 %v607, %v543
    %610 = vrot.lane.b32.xlu0 %v607, 64
    %v611 = vpop.permute.xlu0 %610
    %v613 = vmul.f32 %v607, %v611
    %615 = vrot.lane.b32.xlu0 %v613, 32
    %v616 = vpop.permute.xlu0 %615
    %v618 = vadd.f32 %v608, %v616
    %v619 = vtanh.pop %v618
    %621 = vrot.lane.b32.xlu0 %v619, 64
    %v622 = vpop.permute.xlu0 %621
    %v624 = vmul.f32 %v607, %v622
    %626 = vrot.lane.b32.xlu0 %v624, 32
    %v627 = vpop.permute.xlu0 %626
    %629 = vst.msk [vmem:[#allocation5 + $0xa] sm:$0x3] %vm253, %v627
    %v630 = vld [vmem:[#allocation4 + $0xc] sm:$0x3]
    %v631 = vpack.c.bf16 %v624, %v624
    %633 = vrot.lane.b32.xlu0 %v631, 32
    %v634 = vpop.permute.xlu0 %633
    %v636 = vsel %vm179, %v634, 0
    %638 = vmatprep.subr.bf16.mxu0 0
    %639 = vmatpush1.bf16.msra.mxu0 %v175
    %640 = vmatprep.subr.bf16.mxu0 0
    %641 = vmatpush1.bf16.msra.mxu0 %v176
    %642 = vmatprep.subr.bf16.mxu0 0
    %643 = vmatpush1.bf16.msra.mxu0 0
    %644 = vmatprep.subr.bf16.mxu0 0
    %645 = vmatpush1.bf16.msra.mxu0 0
    %646 = vmatprep.subr.bf16.mxu0 0
    %647 = vmatpush1.bf16.msra.mxu0 0
    %648 = vmatprep.subr.bf16.mxu0 0
    %649 = vmatpush1.bf16.msra.mxu0 0
    %650 = vmatprep.subr.bf16.mxu0 0
    %651 = vmatpush1.bf16.msra.mxu0 0
    %652 = vmatprep.subr.bf16.mxu0 0
    %653 = vmatpush1.bf16.msra.mxu0 0
    %654 = vmatprep.subr.bf16.mxu0 0
    %655 = vmatpush1.bf16.msra.mxu0 0
    %656 = vmatprep.subr.bf16.mxu0 0
    %657 = vmatpush1.bf16.msra.mxu0 0
    %658 = vmatprep.subr.bf16.mxu0 0
    %659 = vmatpush1.bf16.msra.mxu0 0
    %660 = vmatprep.subr.bf16.mxu0 0
    %661 = vmatpush1.bf16.msra.mxu0 0
    %662 = vmatprep.subr.bf16.mxu0 0
    %663 = vmatpush1.bf16.msra.mxu0 0
    %664 = vmatprep.subr.bf16.mxu0 0
    %665 = vmatpush1.bf16.msra.mxu0 0
    %666 = vmatprep.subr.bf16.mxu0 0
    %667 = vmatpush1.bf16.msra.mxu0 0
    %668 = vmatprep.subr.bf16.mxu0 0
    %669 = vmatpush1.bf16.msra.mxu0 0
    %670 = vmatprep.mubr.bf16.mxu0 0
    %671 = vmatmul.mubr.bf16.gmra.mrb[0].mxu0 %v636
    %v672 = vpop.f32.mrb[0].mxu0
    %v673 = vadd.f32 0.0, %v672
    %v674 = vpop.f32.mrb[0].mxu0
    %v675 = vpop.f32.mrb[0].mxu0
    %v676 = vpop.f32.mrb[0].mxu0
    %677 = vdwg.mxu0
    %v678 = vadd.f32 %v630, %v673
    %v679 = vmul.f32 %v678, %v157
    %v680 = vtanh.pop %v679
    %v681 = vmul.f32 %v680, %v157
    %v682 = vadd.f32 %v681, %v158
    %v683 = vmul.f32 %v682, %v618
    %685 = vrot.lane.b32.xlu0 %v682, 64
    %v686 = vpop.permute.xlu0 %685
    %v688 = vmul.f32 %v682, %v686
    %690 = vrot.lane.b32.xlu0 %v688, 32
    %v691 = vpop.permute.xlu0 %690
    %v693 = vadd.f32 %v683, %v691
    %v694 = vtanh.pop %v693
    %696 = vrot.lane.b32.xlu0 %v694, 64
    %v697 = vpop.permute.xlu0 %696
    %v699 = vmul.f32 %v682, %v697
    %701 = vrot.lane.b32.xlu0 %v699, 32
    %v702 = vpop.permute.xlu0 %701
    %704 = vst.msk [vmem:[#allocation5 + $0xc] sm:$0x3] %vm253, %v702
    %v705 = vld [vmem:[#allocation4 + $0xe] sm:$0x3]
    %v706 = vpack.c.bf16 %v699, %v699
    %708 = vrot.lane.b32.xlu0 %v706, 32
    %v709 = vpop.permute.xlu0 %708
    %v711 = vsel %vm179, %v709, 0
    %713 = vmatprep.subr.bf16.mxu0 0
    %714 = vmatpush1.bf16.msra.mxu0 %v175
    %715 = vmatprep.subr.bf16.mxu0 0
    %716 = vmatpush1.bf16.msra.mxu0 %v176
    %717 = vmatprep.subr.bf16.mxu0 0
    %718 = vmatpush1.bf16.msra.mxu0 0
    %719 = vmatprep.subr.bf16.mxu0 0
    %720 = vmatpush1.bf16.msra.mxu0 0
    %721 = vmatprep.subr.bf16.mxu0 0
    %722 = vmatpush1.bf16.msra.mxu0 0
    %723 = vmatprep.subr.bf16.mxu0 0
    %724 = vmatpush1.bf16.msra.mxu0 0
    %725 = vmatprep.subr.bf16.mxu0 0
    %726 = vmatpush1.bf16.msra.mxu0 0
    %727 = vmatprep.subr.bf16.mxu0 0
    %728 = vmatpush1.bf16.msra.mxu0 0
    %729 = vmatprep.subr.bf16.mxu0 0
    %730 = vmatpush1.bf16.msra.mxu0 0
    %731 = vmatprep.subr.bf16.mxu0 0
    %732 = vmatpush1.bf16.msra.mxu0 0
    %733 = vmatprep.subr.bf16.mxu0 0
    %734 = vmatpush1.bf16.msra.mxu0 0
    %735 = vmatprep.subr.bf16.mxu0 0
    %736 = vmatpush1.bf16.msra.mxu0 0
    %737 = vmatprep.subr.bf16.mxu0 0
    %738 = vmatpush1.bf16.msra.mxu0 0
    %739 = vmatprep.subr.bf16.mxu0 0
    %740 = vmatpush1.bf16.msra.mxu0 0
    %741 = vmatprep.subr.bf16.mxu0 0
    %742 = vmatpush1.bf16.msra.mxu0 0
    %743 = vmatprep.subr.bf16.mxu0 0
    %744 = vmatpush1.bf16.msra.mxu0 0
    %745 = vmatprep.mubr.bf16.mxu0 0
    %746 = vmatmul.mubr.bf16.gmra.mrb[0].mxu0 %v711
    %v747 = vpop.f32.mrb[0].mxu0
    %v748 = vadd.f32 0.0, %v747
    %v749 = vpop.f32.mrb[0].mxu0
    %v750 = vpop.f32.mrb[0].mxu0
    %v751 = vpop.f32.mrb[0].mxu0
    %752 = vdwg.mxu0
    %v753 = vadd.f32 %v705, %v748
    %v754 = vmul.f32 %v753, %v157
    %v755 = vtanh.pop %v754
    %v756 = vmul.f32 %v755, %v157
    %v757 = vadd.f32 %v756, %v158
    %v758 = vmul.f32 %v757, %v693
    %760 = vrot.lane.b32.xlu0 %v757, 64
    %v761 = vpop.permute.xlu0 %760
    %v763 = vmul.f32 %v757, %v761
    %765 = vrot.lane.b32.xlu0 %v763, 32
    %v766 = vpop.permute.xlu0 %765
    %v768 = vadd.f32 %v758, %v766
    %v769 = vtanh.pop %v768
    %771 = vrot.lane.b32.xlu0 %v769, 64
    %v772 = vpop.permute.xlu0 %771
    %v774 = vmul.f32 %v757, %v772
    %776 = vrot.lane.b32.xlu0 %v774, 32
    %v777 = vpop.permute.xlu0 %776
    %779 = vst.msk [vmem:[#allocation5 + $0xe] sm:$0x3] %vm253, %v777
    %780 = vst.msk [vmem:[#allocation2] sm:$0x3] %vm253, %v777
    %782 = vrot.lane.b32.xlu0 %v768, 96
    %v783 = vpop.permute.xlu0 %782
    %785 = vst.msk [vmem:[#allocation3] sm:$0x3] %vm253, %v783
    %v786 = vld [vmem:[#allocation5] sm:$0xff]
    %v787 = vld [vmem:[#allocation5 + $0x8] sm:$0xff]
    %v788 = vpack.c.bf16 %v787, %v786
    %v789 = vld [vmem:[#allocation12] sm:$0xf]
    %v790 = vld [vmem:[#allocation12 + $0x4] sm:$0xf]
    %v791 = vld [vmem:[#allocation12 + $0x8] sm:$0xf]
    %v792 = vld [vmem:[#allocation12 + $0xc] sm:$0xf]
    %v793 = vld [vmem:[%s5] sm:$0x1]
    %v795 = vlaneseq
    %v796 = vshrl.u32 %v795, 7
    %v797 = vsub.s32 0, %v796
    %v798 = vrot.slane %v793, %v797
    %v804 = vunpack.c.l.b16 %v789
    %v805 = vunpack.c.l.b16 %v790
    %v806 = vunpack.c.l.b16 %v791
    %v807 = vunpack.c.l.b16 %v792
    %v808 = vpack.c.b16 %v805, %v804
    %v809 = vpack.c.b16 %v807, %v806
    %v813 = vsel %vm179, %v788, 0
    %815 = vmatprep.subr.bf16.mxu0 0
    %816 = vmatpush1.bf16.msra.mxu0 %v808
    %817 = vmatprep.subr.bf16.mxu0 0
    %818 = vmatpush1.bf16.msra.mxu0 %v809
    %819 = vmatprep.subr.bf16.mxu0 0
    %820 = vmatpush1.bf16.msra.mxu0 0
    %821 = vmatprep.subr.bf16.mxu0 0
    %822 = vmatpush1.bf16.msra.mxu0 0
    %823 = vmatprep.subr.bf16.mxu0 0
    %824 = vmatpush1.bf16.msra.mxu0 0
    %825 = vmatprep.subr.bf16.mxu0 0
    %826 = vmatpush1.bf16.msra.mxu0 0
    %827 = vmatprep.subr.bf16.mxu0 0
    %828 = vmatpush1.bf16.msra.mxu0 0
    %829 = vmatprep.subr.bf16.mxu0 0
    %830 = vmatpush1.bf16.msra.mxu0 0
    %831 = vmatprep.subr.bf16.mxu0 0
    %832 = vmatpush1.bf16.msra.mxu0 0
    %833 = vmatprep.subr.bf16.mxu0 0
    %834 = vmatpush1.bf16.msra.mxu0 0
    %835 = vmatprep.subr.bf16.mxu0 0
    %836 = vmatpush1.bf16.msra.mxu0 0
    %837 = vmatprep.subr.bf16.mxu0 0
    %838 = vmatpush1.bf16.msra.mxu0 0
    %839 = vmatprep.subr.bf16.mxu0 0
    %840 = vmatpush1.bf16.msra.mxu0 0
    %841 = vmatprep.subr.bf16.mxu0 0
    %842 = vmatpush1.bf16.msra.mxu0 0
    %843 = vmatprep.subr.bf16.mxu0 0
    %844 = vmatpush1.bf16.msra.mxu0 0
    %845 = vmatprep.subr.bf16.mxu0 0
    %846 = vmatpush1.bf16.msra.mxu0 0
    %847 = vmatprep.mubr.bf16.mxu0 0
    %848 = vmatmul.mubr.bf16.gmra.mrb[0].mxu0 %v813
    %v849 = vpop.f32.mrb[0].mxu0
    %v850 = vadd.f32 %v798, %v849
    %v851 = vpop.f32.mrb[0].mxu0
    %v852 = vpop.f32.mrb[0].mxu0
    %v853 = vadd.f32 %v798, %v852
    %v854 = vpop.f32.mrb[0].mxu0
    %855 = vdwg.mxu0
    %v856 = vtanh.pop %v850
    %v857 = vtanh.pop %v853
    %858 = vst.msk [vmem:[#allocation14] sm:$0xff] %vm179, %v856
    %859 = vst.msk [vmem:[#allocation14 + $0x8] sm:$0xff] %vm179, %v857
    // Predicated region
    $region46: #{tpu_custom_call.1} parent=1 // pred_check
      _
    $region47: #{tpu_custom_call.1} parent=1 // pred_check_branch
      %861 = sbr.rel (0) target = $region49
    $region48: #{tpu_custom_call.1} parent=1 // pred_region
      %s863 = ssub.s32 256, 256
      %864 = vsyncadd [#allocation8], %s863
      %s865 = sshll.u32 [#allocation14], 4
      %s866 = int_to_ptr.vmem [resolvable:$true] %s865
      %871 = dma.vmem_to_hbm [thread:$0]  %s866, 256, %s6, [#allocation8], 128, 128, 8
    $region49: #{tpu_custom_call.1} parent=1 // pred_fallthru
      _
    // Predicated region
    $region50: #{tpu_custom_call.1} parent=1 // pred_check
      _
    $region51: #{tpu_custom_call.1} parent=1 // pred_check_branch
      %873 = sbr.rel (0) target = $region53
    $region52: #{tpu_custom_call.1} parent=1 // pred_region
      %874 = dma.done [#allocation8], 256
    $region53: #{tpu_custom_call.1} parent=1 // pred_fallthru
      _
    %875 = vsyncpa [#allocation7], 1
    %876 = vsyncpa [#allocation10], 1
    %877 = vsyncpa [#allocation13], 1
    %878 = vsyncpa [#allocation8], 1

</llo_original>
